<compile_context>
chip_gen: v7x
topology: tpu7x:2x2x1
jax: 0.10.0
libtpu: 0.0.40
codegen_flags: <defaults>
</compile_context>

<pallas_src>
import math

import jax
import jax.numpy as jnp
from jax import lax
from jax.experimental import pallas as pl
from jax.experimental.pallas import tpu as pltpu


# -----------------------------------------------------------------------------
# Kernel 1: batch-independent GCN head -> x2^T, zero-padded, bf16.
# -----------------------------------------------------------------------------
def _gcn_head_kernel(inp_ref, a_ref, w1_ref, w2_ref, x2t_ref):
    # inp_ref: [NC, IN]  a_ref: [NC, NC]  w1_ref: [IN, H1]  w2_ref: [H1, C2]
    # x2t_ref: [C2, NCP]  (bf16, classes zero-padded to a multiple of 128)
    a = a_ref[...]
    # gen_adj(A): D = A.sum(1)^(-1/2); adj = (A @ diag(D)).T @ diag(D)
    #   => adj[i, j] = D[i] * A[j, i] * D[j]
    d = lax.rsqrt(jnp.sum(a, axis=1))
    adj = a.T * d[:, None] * d[None, :]

    # One-shot and tiny (NC ~ 80 rows): keep the chain in f32 for accuracy --
    # MXU underfill here is irrelevant to end-to-end time.
    s1 = jnp.dot(inp_ref[...], w1_ref[...], preferred_element_type=jnp.float32)
    x1 = jnp.dot(adj, s1, preferred_element_type=jnp.float32)
    x1 = jnp.where(x1 >= 0, x1, 0.2 * x1)  # LeakyReLU(0.2)
    s2 = jnp.dot(x1, w2_ref[...], preferred_element_type=jnp.float32)
    x2 = jnp.dot(adj, s2, preferred_element_type=jnp.float32)  # [NC, C2]

    nc = x2.shape[0]
    c2, ncp = x2t_ref.shape
    x2t = x2.T  # [C2, NC]
    if ncp > nc:  # zero-pad classes to the lane-dense width
        x2t = jnp.concatenate(
            [x2t, jnp.zeros((c2, ncp - nc), jnp.float32)], axis=1)
    x2t_ref[...] = x2t.astype(x2t_ref.dtype)


def _gcn_head(inp, A, w1, w2, ncp):
    c2 = w2.shape[1]
    vmem = pl.BlockSpec(memory_space=pltpu.MemorySpace.VMEM)
    return pl.pallas_call(
        _gcn_head_kernel,
        out_shape=jax.ShapeDtypeStruct((c2, ncp), jnp.bfloat16),
        in_specs=[vmem] * 4,
        out_specs=vmem,
        compiler_params=pltpu.CompilerParams(vmem_limit_bytes=32 * 1024 * 1024),
    )(inp, A, w1, w2)


# -----------------------------------------------------------------------------
# Kernel 2: batch-tiled MaxPool(14,14)+flatten + final classification matmul.
# -----------------------------------------------------------------------------
def _pool_classify_kernel(feat_ref, x2t_ref, out_ref):
    # feat_ref: [TB, C, HW] bf16   x2t_ref: [C, NCP] bf16   out_ref: [TB, NCP] f32
    # MaxPool2d(14,14) + view(B, -1)  ==  max over the spatial (lane) axis.
    pooled = jnp.max(feat_ref[...], axis=-1)  # [TB, C]
    # bf16 x bf16 MXU matmul, f32 accumulation.
    out_ref[...] = jnp.dot(pooled, x2t_ref[...],
                           preferred_element_type=jnp.float32)


def _vmem_limit_bytes():
    """Generation-aware VMEM limit: ~44 MiB on v7x (64 MiB/TC), 64 MiB on
    v5e/v6e (128 MiB/TC)."""
    cap = 128 << 20
    try:
        info = pltpu.get_tpu_info()
        cap = int(getattr(info, "vmem_capacity_bytes", cap) or cap)
    except Exception:
        pass
    limit = min(cap - (20 << 20), 64 << 20)   # leave headroom for Mosaic scratch
    return int(max(limit, 32 << 20))


def _pick_batch_tile(b, c, hw, feat_itemsize, x2t_vmem_bytes, ncp, vmem_limit):
    """Largest batch tile that (a) keeps the output sublane block legal
    (multiple of 8, or == B when B < 8), (b) fits the double-buffered feat tile
    + resident x2^T + double-buffered out tile in `vmem_limit`, and (c) prefers
    >= 2 grid steps so v7x's two TensorCores both get work."""
    if b < 8:
        return b
    hw_pad = -(-hw // 128) * 128            # lane padding inside VMEM
    per_img = c * hw_pad * feat_itemsize    # VMEM bytes per image in a feat buffer

    valid = [tb for tb in range(8, b + 1, 8) if b % tb == 0] or [b]

    def vmem_use(tb):
        feat = 2 * tb * per_img             # double-buffered feat stream
        out = 2 * tb * ncp * 4              # double-buffered f32 out tile
        return feat + out + x2t_vmem_bytes + (2 << 20)   # +2 MiB misc headroom

    fitting = [tb for tb in valid if vmem_use(tb) <= vmem_limit]
    if not fitting:
        return min(valid)                   # best effort (smallest legal tile)
    multi = [tb for tb in fitting if b // tb >= 2]   # >=2 steps -> megacore on v7x
    return max(multi) if multi else max(fitting)


def ml_gcn_forward(feat_nchw, inp, A, w1, w2):
    """feat_nchw: [B, C2, H, W] backbone output (PyTorch NCHW, f32 or bf16).
       inp:       [NC, IN]   label embeddings (already inp[0]).
       A:         [NC, NC]   raw adjacency parameter.
       w1:        [IN, H1]   gc1 weight.
       w2:        [H1, C2]   gc2 weight.
       returns:   [B, NC]    class logits (f32)."""
    B, C, H, W = feat_nchw.shape
    nc = A.shape[0]
    hw = H * W
    c2 = w2.shape[1]
    assert c2 == C, (c2, C)
    ncp = pl.cdiv(nc, 128) * 128

    # 1) One-shot GCN head -> x2^T in bf16, [C2, NCP] (transposed + padded
    #    in-kernel: no wrapper transpose/pad/cast round-trip).
    x2t = _gcn_head(inp, A, w1, w2, ncp)

    # 2) Consume NCHW directly: merging (H, W) -> H*W is a free reshape (no
    #    relayout HBM pass).  Stream in bf16: max-pool is exact, the dot
    #    accumulates in f32.
    feat = feat_nchw.reshape(B, C, hw)
    if feat.dtype != jnp.bfloat16:
        # TODO(synk): ideally the backbone emits bf16 natively and this cast
        # fuses into its epilogue instead of being a standalone pass.
        feat = feat.astype(jnp.bfloat16)

    vmem_limit = _vmem_limit_bytes()
    # x2^T uses a constant index_map (never re-fetched after step 0) but still
    # allocates two buffers; count both in the budget.
    x2t_vmem = 2 * c2 * ncp * 2
    tb = _pick_batch_tile(B, C, hw, 2, x2t_vmem, ncp, vmem_limit)
    grid = (B // tb,)

    out = pl.pallas_call(
        _pool_classify_kernel,
        out_shape=jax.ShapeDtypeStruct((B, ncp), jnp.float32),
        grid_spec=pltpu.PrefetchScalarGridSpec(
            num_scalar_prefetch=0,
            grid=grid,
            in_specs=[
                pl.BlockSpec((tb, C, hw), lambda i: (i, 0, 0)),  # streamed feat tile
                pl.BlockSpec((c2, ncp), lambda i: (0, 0)),       # resident x2^T
            ],
            out_specs=pl.BlockSpec((tb, ncp), lambda i: (i, 0)),
        ),
        compiler_params=pltpu.CompilerParams(
            dimension_semantics=("parallel",),   # megacore sharding on v7x
            vmem_limit_bytes=vmem_limit,
        ),
    )(feat, x2t)

    return out[:, :nc]


def _reference(feat_nchw, inp, A, w1, w2):
    pooled = jnp.max(
        feat_nchw.reshape(feat_nchw.shape[0], feat_nchw.shape[1], -1), axis=-1
    )
    d = jnp.power(jnp.sum(A, axis=1), -0.5)
    adj = (A @ jnp.diag(d)).T @ jnp.diag(d)
    x = adj @ (inp @ w1)
    x = jnp.where(x >= 0, x, 0.2 * x)
    x = adj @ (x @ w2)
    return pooled @ x.T


if __name__ == "__main__":
    # Small, TPU-friendly stand-ins for the real sizes
    # (real: in_channel=300, gc1->1024, gc2->2048, feature map [B,2048,14,14]).
    B, C2, H, W = 2, 256, 14, 14
    NC, IN, H1 = 16, 64, 128

    key = jax.random.PRNGKey(0)
    k_feat, k_inp, k_a, k_w1, k_w2 = jax.random.split(key, 5)

    feat_f32 = jax.random.normal(k_feat, (B, C2, H, W), dtype=jnp.float32)
    # Stream the backbone output in bf16 (what a TPU backbone emits natively).
    feat = feat_f32.astype(jnp.bfloat16)
    inp = jax.random.normal(k_inp, (NC, IN), dtype=jnp.float32)

    # Adjacency parameter: positive correlations + identity (keeps row sums > 0).
    A = jax.random.uniform(k_a, (NC, NC), dtype=jnp.float32) + jnp.eye(NC, dtype=jnp.float32)

    # GraphConvolution.reset_parameters: uniform(-stdv, stdv), stdv = 1/sqrt(out_features)
    stdv1 = 1.0 / math.sqrt(H1)
    w1 = jax.random.uniform(k_w1, (IN, H1), dtype=jnp.float32, minval=-stdv1, maxval=stdv1)
    stdv2 = 1.0 / math.sqrt(C2)
    w2 = jax.random.uniform(k_w2, (H1, C2), dtype=jnp.float32, minval=-stdv2, maxval=stdv2)

    out = ml_gcn_forward(feat, inp, A, w1, w2)
    out = jax.block_until_ready(out)

    ref = _reference(feat.astype(jnp.float32), inp, A, w1, w2)
    assert out.shape == (B, NC), out.shape
    err = jnp.max(jnp.abs(out - ref))
    # bf16 streaming of feat / x2^T (f32 accumulation) -> bf16-level tolerance.
    assert jnp.allclose(out, ref, atol=1e-1, rtol=2e-2), err

    print("KERNEL_OK")
</pallas_src>

<mosaic_0001>
module attributes {stable_mosaic.version = 11 : i64} {
  func.func @_gcn_head_kernel(%arg0: memref<16x64xf32, #tpu.memory_space<vmem>>, %arg1: memref<16x16xf32, #tpu.memory_space<vmem>>, %arg2: memref<64x128xf32, #tpu.memory_space<vmem>>, %arg3: memref<128x256xf32, #tpu.memory_space<vmem>>, %arg4: memref<256x128xbf16, #tpu.memory_space<vmem>>) attributes {dimension_semantics = [], scalar_prefetch = 0 : i64, scratch_operands = 0 : i64, tpu.core_type = #tpu.core_type<tc>} {
    %c0 = arith.constant 0 : index
    %c0_0 = arith.constant 0 : index
    %0 = vector.load %arg1[%c0, %c0_0] : memref<16x16xf32, #tpu.memory_space<vmem>>, vector<16x16xf32>
    %cst = arith.constant dense<0.000000e+00> : vector<16xf32>
    %1 = vector.multi_reduction <add>, %0, %cst [1] : vector<16x16xf32> to vector<16xf32>
    %2 = math.rsqrt %1 : vector<16xf32>
    %3 = tpu.transpose %0, [1, 0] : vector<16x16xf32> -> vector<16x16xf32>
    %4 = vector.shape_cast %2 : vector<16xf32> to vector<16x1xf32>
    %5 = vector.broadcast %4 : vector<16x1xf32> to vector<16x16xf32>
    %6 = arith.mulf %3, %5 : vector<16x16xf32>
    %7 = vector.shape_cast %2 : vector<16xf32> to vector<1x16xf32>
    %8 = vector.broadcast %7 : vector<1x16xf32> to vector<16x16xf32>
    %9 = arith.mulf %6, %8 : vector<16x16xf32>
    %c0_1 = arith.constant 0 : index
    %c0_2 = arith.constant 0 : index
    %10 = vector.load %arg0[%c0_1, %c0_2] : memref<16x64xf32, #tpu.memory_space<vmem>>, vector<16x64xf32>
    %c0_3 = arith.constant 0 : index
    %c0_4 = arith.constant 0 : index
    %11 = vector.load %arg2[%c0_3, %c0_4] : memref<64x128xf32, #tpu.memory_space<vmem>>, vector<64x128xf32>
    %cst_5 = arith.constant dense<0.000000e+00> : vector<16x128xf32>
    %12 = tpu.matmul %10, %11, %cst_5 {dimension_numbers = #tpu.dot_dimension_numbers<[1], [0], [0], [1], [0, 0, 1, 1], [], []>} : vector<16x64xf32>, vector<64x128xf32>, vector<16x128xf32> -> vector<16x128xf32>
    %cst_6 = arith.constant dense<0.000000e+00> : vector<16x128xf32>
    %13 = tpu.matmul %9, %12, %cst_6 {dimension_numbers = #tpu.dot_dimension_numbers<[1], [0], [0], [1], [0, 0, 1, 1], [], []>} : vector<16x16xf32>, vector<16x128xf32>, vector<16x128xf32> -> vector<16x128xf32>
    %cst_7 = arith.constant 0.000000e+00 : f32
    %14 = vector.broadcast %cst_7 : f32 to vector<16x128xf32>
    %15 = arith.cmpf oge, %13, %14 : vector<16x128xf32>
    %cst_8 = arith.constant 2.000000e-01 : f32
    %16 = vector.broadcast %cst_8 : f32 to vector<16x128xf32>
    %17 = arith.mulf %16, %13 : vector<16x128xf32>
    %18 = arith.select %15, %13, %17 : vector<16x128xi1>, vector<16x128xf32>
    %c0_9 = arith.constant 0 : index
    %c0_10 = arith.constant 0 : index
    %19 = vector.load %arg3[%c0_9, %c0_10] : memref<128x256xf32, #tpu.memory_space<vmem>>, vector<128x256xf32>
    %cst_11 = arith.constant dense<0.000000e+00> : vector<16x256xf32>
    %20 = tpu.matmul %18, %19, %cst_11 {dimension_numbers = #tpu.dot_dimension_numbers<[1], [0], [0], [1], [0, 0, 1, 1], [], []>} : vector<16x128xf32>, vector<128x256xf32>, vector<16x256xf32> -> vector<16x256xf32>
    %cst_12 = arith.constant dense<0.000000e+00> : vector<16x256xf32>
    %21 = tpu.matmul %9, %20, %cst_12 {dimension_numbers = #tpu.dot_dimension_numbers<[1], [0], [0], [1], [0, 0, 1, 1], [], []>} : vector<16x16xf32>, vector<16x256xf32>, vector<16x256xf32> -> vector<16x256xf32>
    %22 = tpu.transpose %21, [1, 0] : vector<16x256xf32> -> vector<256x16xf32>
    %cst_13 = arith.constant 0.000000e+00 : f32
    %23 = vector.broadcast %cst_13 : f32 to vector<256x112xf32>
    %24 = tpu.concatenate %22, %23 in 1 : vector<256x16xf32>, vector<256x112xf32> -> vector<256x128xf32>
    %25 = arith.truncf %24 : vector<256x128xf32> to vector<256x128xbf16>
    %c0_14 = arith.constant 0 : index
    %c0_15 = arith.constant 0 : index
    %26 = vector.load %arg4[%c0_14, %c0_15] : memref<256x128xbf16, #tpu.memory_space<vmem>>, vector<256x128xbf16>
    tpu.vector_store %arg4[%c0_14, %c0_15], %25 {strides = array<i32>} : memref<256x128xbf16, #tpu.memory_space<vmem>>, vector<256x128xbf16>,
    return
  }
}

</mosaic_0001>

<llo_original>
// kernel: tpu_custom_call.1
$region0: #{tpu_custom_call.1}
  #allocation0 [shape = 'u32[]', space=smem, size = 0x4, offset = 0x4, fixed_abs, tag = 'smem constant byte address 0x4 - core index']
  #allocation1 [shape = 'u32[144,128]{1,0:T(1,128)}', space=vmem, size = 0x12000, scoped, tag = 'internal scratch']
  %s0 = inlined_call_operand.hbm [shape: f32[16,64], index: 0, kind: input, shape index: {}]
  %s1 = inlined_call_operand.hbm [shape: f32[16,16], index: 1, kind: input, shape index: {}]
  %s2 = inlined_call_operand.hbm [shape: f32[64,128], index: 2, kind: input, shape index: {}]
  %s3 = inlined_call_operand.hbm [shape: f32[128,256], index: 3, kind: input, shape index: {}]
  %s4 = inlined_call_operand.hbm [shape: bf16[256,128], index: 4, kind: output, shape index: {}]
  %s5 = sld [smem:[#allocation0]]
  $region42: #{tpu_custom_call.1} parent=0
    _
  %s7 = ssub.s32 1, %s5
  %s8 = scalar_select 0, %s7, %s5
  $region1: #{tpu_custom_call.1} parent=0
    #allocation2 [shape = 'u8[8192]{0}', space=vmem, size = 0x2000, scoped, tag = 'input window, operand 0, single buffered']
    #allocation3 [shape = 's32[1]{0}', space=sflag, size = 0x4, scoped, tag = 'scoped memory for tpu_custom_call.1']
    #allocation4 [shape = 's32[1]{0}', space=sflag, size = 0x4, scoped, tag = 'scoped memory for tpu_custom_call.1']
    #allocation5 [shape = 'u8[8192]{0}', space=vmem, size = 0x2000, scoped, tag = 'input window, operand 1, single buffered']
    #allocation6 [shape = 's32[1]{0}', space=sflag, size = 0x4, scoped, tag = 'scoped memory for tpu_custom_call.1']
    #allocation7 [shape = 'u8[32768]{0}', space=vmem, size = 0x8000, scoped, tag = 'input window, operand 2, single buffered']
    #allocation8 [shape = 'u8[131072]{0}', space=vmem, size = 0x20000, scoped, tag = 'input window, operand 3, single buffered']
    #allocation9 [shape = 's32[1]{0}', space=sflag, size = 0x4, scoped, tag = 'scoped memory for tpu_custom_call.1']
    #allocation10 [shape = 'u8[65536]{0}', space=vmem, size = 0x10000, scoped, tag = 'output window, operand 0, single buffered']
    %9 = vsyncpa [#allocation3], 0
    %10 = vsyncpa [#allocation6], 0
    %11 = vsyncpa [#allocation9], 0
    %12 = vsyncpa [#allocation4], 0
    // Predicated region
    $region2: #{tpu_custom_call.1} parent=1 // pred_check
      _
    $region3: #{tpu_custom_call.1} parent=1 // pred_check_branch
      %14 = sbr.rel (0) target = $region5
    $region4: #{tpu_custom_call.1} parent=1 // pred_region
      %s16 = ssub.s32 256, 256
      %17 = vsyncadd [#allocation3], %s16
      %s18 = sshll.u32 [#allocation2], 4
      %s19 = int_to_ptr.vmem [resolvable:$true] %s18
      %24 = dma.hbm_to_vmem [thread:$0]  %s0, 256, %s19, [#allocation3], 128, 128, 8
    $region5: #{tpu_custom_call.1} parent=1 // pred_fallthru
      _
    // Predicated region
    $region6: #{tpu_custom_call.1} parent=1 // pred_check
      _
    $region7: #{tpu_custom_call.1} parent=1 // pred_check_branch
      %26 = sbr.rel (0) target = $region9
    $region8: #{tpu_custom_call.1} parent=1 // pred_region
      %s28 = ssub.s32 256, 256
      %29 = vsyncadd [#allocation6], %s28
      %s30 = sshll.u32 [#allocation5], 4
      %s31 = int_to_ptr.vmem [resolvable:$true] %s30
      %36 = dma.hbm_to_vmem [thread:$0]  %s1, 256, %s31, [#allocation6], 128, 128, 8
    $region9: #{tpu_custom_call.1} parent=1 // pred_fallthru
      _
    // Predicated region
    $region10: #{tpu_custom_call.1} parent=1 // pred_check
      _
    $region11: #{tpu_custom_call.1} parent=1 // pred_check_branch
      %38 = sbr.rel (0) target = $region13
    $region12: #{tpu_custom_call.1} parent=1 // pred_region
      %s40 = ssub.s32 1024, 1024
      %41 = vsyncadd [#allocation6], %s40
      %s42 = sshll.u32 [#allocation7], 4
      %s43 = int_to_ptr.vmem [resolvable:$true] %s42
      %48 = dma.hbm_to_vmem [thread:$0]  %s2, 1024, %s43, [#allocation6], 128, 128, 8
    $region13: #{tpu_custom_call.1} parent=1 // pred_fallthru
      _
    // Predicated region
    $region14: #{tpu_custom_call.1} parent=1 // pred_check
      _
    $region15: #{tpu_custom_call.1} parent=1 // pred_check_branch
      %50 = sbr.rel (0) target = $region17
    $region16: #{tpu_custom_call.1} parent=1 // pred_region
      %s52 = ssub.s32 4096, 4096
      %53 = vsyncadd [#allocation9], %s52
      %s54 = sshll.u32 [#allocation8], 4
      %s55 = int_to_ptr.vmem [resolvable:$true] %s54
      %60 = dma.hbm_to_vmem [thread:$0]  %s3, 4096, %s55, [#allocation9], 256, 256, 16
    $region17: #{tpu_custom_call.1} parent=1 // pred_fallthru
      _
    // Predicated region
    $region18: #{tpu_custom_call.1} parent=1 // pred_check
      _
    $region19: #{tpu_custom_call.1} parent=1 // pred_check_branch
      %62 = sbr.rel (0) target = $region21
    $region20: #{tpu_custom_call.1} parent=1 // pred_region
      %63 = dma.done [#allocation3], 256
    $region21: #{tpu_custom_call.1} parent=1 // pred_fallthru
      _
    // Predicated region
    $region22: #{tpu_custom_call.1} parent=1 // pred_check
      _
    $region23: #{tpu_custom_call.1} parent=1 // pred_check_branch
      %65 = sbr.rel (0) target = $region25
    $region24: #{tpu_custom_call.1} parent=1 // pred_region
      %66 = dma.done [#allocation6], 256
    $region25: #{tpu_custom_call.1} parent=1 // pred_fallthru
      _
    // Predicated region
    $region26: #{tpu_custom_call.1} parent=1 // pred_check
      _
    $region27: #{tpu_custom_call.1} parent=1 // pred_check_branch
      %68 = sbr.rel (0) target = $region29
    $region28: #{tpu_custom_call.1} parent=1 // pred_region
      %69 = dma.done [#allocation6], 1024
    $region29: #{tpu_custom_call.1} parent=1 // pred_fallthru
      _
    // Predicated region
    $region30: #{tpu_custom_call.1} parent=1 // pred_check
      _
    $region31: #{tpu_custom_call.1} parent=1 // pred_check_branch
      %71 = sbr.rel (0) target = $region33
    $region32: #{tpu_custom_call.1} parent=1 // pred_region
      %72 = dma.done [#allocation9], 4096
    $region33: #{tpu_custom_call.1} parent=1 // pred_fallthru
      _
    %v73 = vld [vmem:[#allocation5] sm:$0xff]
    %v74 = vld [vmem:[#allocation5 + $0x8] sm:$0xff]
    %vm75 = vcmask 130048
    %v76 = vsel %vm75, %v73, 0.0
    %77 = vadd.xlane.f32.xlu0 %v76
    %v78 = vpop.xlane.xlu0 %77
    %v79 = vsel %vm75, %v74, 0.0
    %80 = vadd.xlane.f32.xlu0 %v79
    %v81 = vpop.xlane.xlu0 %80
    %v82 = vrsqrt.pop %v78
    %v83 = vrsqrt.pop %v81
    %84 = vxpose.xlu0.b32.start [1/16] %v73, 128
    %85 = vxpose.xlu0.b32.cont [2/16] %v74, 128
    %86 = vxpose.xlu0.b32.cont [3/16] 0.0, 128
    %87 = vxpose.xlu0.b32.cont [4/16] 0.0, 128
    %88 = vxpose.xlu0.b32.cont [5/16] 0.0, 128
    %89 = vxpose.xlu0.b32.cont [6/16] 0.0, 128
    %90 = vxpose.xlu0.b32.cont [7/16] 0.0, 128
    %91 = vxpose.xlu0.b32.cont [8/16] 0.0, 128
    %92 = vxpose.xlu0.b32.cont [9/16] 0.0, 128
    %93 = vxpose.xlu0.b32.cont [10/16] 0.0, 128
    %94 = vxpose.xlu0.b32.cont [11/16] 0.0, 128
    %95 = vxpose.xlu0.b32.cont [12/16] 0.0, 128
    %96 = vxpose.xlu0.b32.cont [13/16] 0.0, 128
    %97 = vxpose.xlu0.b32.cont [14/16] 0.0, 128
    %98 = vxpose.xlu0.b32.cont [15/16] 0.0, 128
    %99 = vxpose.xlu0.b32.end [16/16] 0.0, 128
    %v100 = vpop.trf.xlu0
    %v101 = vpop.trf.xlu0
    %v102 = vpop.trf.xlu0
    %v103 = vpop.trf.xlu0
    %v104 = vpop.trf.xlu0
    %v105 = vpop.trf.xlu0
    %v106 = vpop.trf.xlu0
    %v107 = vpop.trf.xlu0
    %v108 = vpop.trf.xlu0
    %v109 = vpop.trf.xlu0
    %v110 = vpop.trf.xlu0
    %v111 = vpop.trf.xlu0
    %v112 = vpop.trf.xlu0
    %v113 = vpop.trf.xlu0
    %v114 = vpop.trf.xlu0
    %v115 = vpop.trf.xlu0
    %v116 = vmul.f32 %v100, %v82
    %v117 = vmul.f32 %v101, %v83
    %v120 = vlaneseq
    %v121 = vand.u32 %v120, 127
    %v122 = vlaneseq
    %v123 = vshrl.u32 %v122, 7
    %v124 = vsub.s32 %v121, %v123
    %v125 = vrot.slane %v82, %v124
    %v126 = vadd.s32 %v121, 4294967288
    %v127 = vlaneseq
    %v128 = vshrl.u32 %v127, 7
    %v129 = vsub.s32 %v126, %v128
    %v130 = vrot.slane %v83, %v129
    %vm131 = vcmask 130112
    %v132 = vsel %vm131, %v130, %v125
    %vm133 = vcmask 1042434
    %v134 = vsel %vm133, %v132, %v132
    %vm135 = vcmask 1043459
    %v136 = vsel %vm135, %v132, %v134
    %vm137 = vcmask 1044484
    %v138 = vsel %vm137, %v132, %v136
    %vm139 = vcmask 1045509
    %v140 = vsel %vm139, %v132, %v138
    %vm141 = vcmask 1046534
    %v142 = vsel %vm141, %v132, %v140
    %vm143 = vcmask 1047559
    %v144 = vsel %vm143, %v132, %v142
    %v146 = vmul.f32 %v116, %v144
    %v147 = vmul.f32 %v117, %v144
    %v148 = vld [vmem:[#allocation2] sm:$0xff]
    %v149 = vld [vmem:[#allocation2 + $0x8] sm:$0xff]
    %v150 = vld [vmem:[#allocation7] sm:$0xff]
    %v151 = vld [vmem:[#allocation7 + $0x8] sm:$0xff]
    %v152 = vld [vmem:[#allocation7 + $0x10] sm:$0xff]
    %v153 = vld [vmem:[#allocation7 + $0x18] sm:$0xff]
    %v154 = vld [vmem:[#allocation7 + $0x20] sm:$0xff]
    %v155 = vld [vmem:[#allocation7 + $0x28] sm:$0xff]
    %v156 = vld [vmem:[#allocation7 + $0x30] sm:$0xff]
    %v157 = vld [vmem:[#allocation7 + $0x38] sm:$0xff]
    %vm158 = vcmask 523264
    %v160 = vsel %vm158, %v148, 0
    %v163 = vsel %vm158, %v149, 0
    %165 = vmatprep.subr.mxu0 0.0
    %166 = vmatpush1.msra.mxu0 %v150
    %167 = vmatprep.subr.mxu0 0.0
    %168 = vmatpush1.msra.mxu0 %v151
    %169 = vmatprep.subr.mxu0 0.0
    %170 = vmatpush1.msra.mxu0 %v152
    %171 = vmatprep.subr.mxu0 0.0
    %172 = vmatpush1.msra.mxu0 %v153
    %173 = vmatprep.subr.mxu0 0.0
    %174 = vmatpush1.msra.mxu0 %v154
    %175 = vmatprep.subr.mxu0 0.0
    %176 = vmatpush1.msra.mxu0 %v155
    %177 = vmatprep.subr.mxu0 0.0
    %178 = vmatpush1.msra.mxu0 %v156
    %179 = vmatprep.subr.mxu0 0.0
    %180 = vmatpush1.msra.mxu0 %v157
    %181 = vmatprep.subr.mxu0 0.0
    %182 = vmatpush1.msra.mxu0 0.0
    %183 = vmatprep.subr.mxu0 0.0
    %184 = vmatpush1.msra.mxu0 0.0
    %185 = vmatprep.subr.mxu0 0.0
    %186 = vmatpush1.msra.mxu0 0.0
    %187 = vmatprep.subr.mxu0 0.0
    %188 = vmatpush1.msra.mxu0 0.0
    %189 = vmatprep.subr.mxu0 0.0
    %190 = vmatpush1.msra.mxu0 0.0
    %191 = vmatprep.subr.mxu0 0.0
    %192 = vmatpush1.msra.mxu0 0.0
    %193 = vmatprep.subr.mxu0 0.0
    %194 = vmatpush1.msra.mxu0 0.0
    %195 = vmatprep.subr.mxu0 0.0
    %196 = vmatpush1.msra.mxu0 0.0
    %197 = vmatprep.subr.mxu0 0.0
    %198 = vmatpush1.msra.mxu0 0.0
    %199 = vmatprep.subr.mxu0 0.0
    %200 = vmatpush1.msra.mxu0 0.0
    %201 = vmatprep.subr.mxu0 0.0
    %202 = vmatpush1.msra.mxu0 0.0
    %203 = vmatprep.subr.mxu0 0.0
    %204 = vmatpush1.msra.mxu0 0.0
    %205 = vmatprep.subr.mxu0 0.0
    %206 = vmatpush1.msra.mxu0 0.0
    %207 = vmatprep.subr.mxu0 0.0
    %208 = vmatpush1.msra.mxu0 0.0
    %209 = vmatprep.subr.mxu0 0.0
    %210 = vmatpush1.msra.mxu0 0.0
    %211 = vmatprep.subr.mxu0 0.0
    %212 = vmatpush1.msra.mxu0 0.0
    %213 = vmatprep.subr.mxu0 0.0
    %214 = vmatpush1.msra.mxu0 0.0
    %215 = vmatprep.subr.mxu0 0.0
    %216 = vmatpush1.msra.mxu0 0.0
    %217 = vmatprep.subr.mxu0 0.0
    %218 = vmatpush1.msra.mxu0 0.0
    %219 = vmatprep.subr.mxu0 0.0
    %220 = vmatpush1.msra.mxu0 0.0
    %221 = vmatprep.subr.mxu0 0.0
    %222 = vmatpush1.msra.mxu0 0.0
    %223 = vmatprep.subr.mxu0 0.0
    %224 = vmatpush1.msra.mxu0 0.0
    %225 = vmatprep.subr.mxu0 0.0
    %226 = vmatpush1.msra.mxu0 0.0
    %227 = vmatprep.subr.mxu0 0.0
    %228 = vmatpush1.msra.mxu0 0.0
    %229 = vmatprep.mubr.f32.mxu0 0.0
    %230 = vmatmul.mubr.f32.gmra.mrb[0].mxu0 %v160
    %v231 = vpop.f32.mrb[0].mxu0
    %v232 = vadd.f32 0.0, %v231
    %v233 = vpop.f32.mrb[0].mxu0
    %234 = vmatprep.mubr.f32.mxu0 0.0
    %235 = vmatmul.mubr.f32.gmra.mrb[0].mxu0 %v163
    %v236 = vpop.f32.mrb[0].mxu0
    %v237 = vadd.f32 0.0, %v236
    %v238 = vpop.f32.mrb[0].mxu0
    %239 = vdwg.mxu0
    %v241 = vsel %vm75, %v146, 0
    %v244 = vsel %vm75, %v147, 0
    %246 = vmatprep.subr.mxu0 0.0
    %247 = vmatpush1.msra.mxu0 %v232
    %248 = vmatprep.subr.mxu0 0.0
    %249 = vmatpush1.msra.mxu0 %v237
    %250 = vmatprep.subr.mxu0 0.0
    %251 = vmatpush1.msra.mxu0 0.0
    %252 = vmatprep.subr.mxu0 0.0
    %253 = vmatpush1.msra.mxu0 0.0
    %254 = vmatprep.subr.mxu0 0.0
    %255 = vmatpush1.msra.mxu0 0.0
    %256 = vmatprep.subr.mxu0 0.0
    %257 = vmatpush1.msra.mxu0 0.0
    %258 = vmatprep.subr.mxu0 0.0
    %259 = vmatpush1.msra.mxu0 0.0
    %260 = vmatprep.subr.mxu0 0.0
    %261 = vmatpush1.msra.mxu0 0.0
    %262 = vmatprep.subr.mxu0 0.0
    %263 = vmatpush1.msra.mxu0 0.0
    %264 = vmatprep.subr.mxu0 0.0
    %265 = vmatpush1.msra.mxu0 0.0
    %266 = vmatprep.subr.mxu0 0.0
    %267 = vmatpush1.msra.mxu0 0.0
    %268 = vmatprep.subr.mxu0 0.0
    %269 = vmatpush1.msra.mxu0 0.0
    %270 = vmatprep.subr.mxu0 0.0
    %271 = vmatpush1.msra.mxu0 0.0
    %272 = vmatprep.subr.mxu0 0.0
    %273 = vmatpush1.msra.mxu0 0.0
    %274 = vmatprep.subr.mxu0 0.0
    %275 = vmatpush1.msra.mxu0 0.0
    %276 = vmatprep.subr.mxu0 0.0
    %277 = vmatpush1.msra.mxu0 0.0
    %278 = vmatprep.subr.mxu0 0.0
    %279 = vmatpush1.msra.mxu0 0.0
    %280 = vmatprep.subr.mxu0 0.0
    %281 = vmatpush1.msra.mxu0 0.0
    %282 = vmatprep.subr.mxu0 0.0
    %283 = vmatpush1.msra.mxu0 0.0
    %284 = vmatprep.subr.mxu0 0.0
    %285 = vmatpush1.msra.mxu0 0.0
    %286 = vmatprep.subr.mxu0 0.0
    %287 = vmatpush1.msra.mxu0 0.0
    %288 = vmatprep.subr.mxu0 0.0
    %289 = vmatpush1.msra.mxu0 0.0
    %290 = vmatprep.subr.mxu0 0.0
    %291 = vmatpush1.msra.mxu0 0.0
    %292 = vmatprep.subr.mxu0 0.0
    %293 = vmatpush1.msra.mxu0 0.0
    %294 = vmatprep.subr.mxu0 0.0
    %295 = vmatpush1.msra.mxu0 0.0
    %296 = vmatprep.subr.mxu0 0.0
    %297 = vmatpush1.msra.mxu0 0.0
    %298 = vmatprep.subr.mxu0 0.0
    %299 = vmatpush1.msra.mxu0 0.0
    %300 = vmatprep.subr.mxu0 0.0
    %301 = vmatpush1.msra.mxu0 0.0
    %302 = vmatprep.subr.mxu0 0.0
    %303 = vmatpush1.msra.mxu0 0.0
    %304 = vmatprep.subr.mxu0 0.0
    %305 = vmatpush1.msra.mxu0 0.0
    %306 = vmatprep.subr.mxu0 0.0
    %307 = vmatpush1.msra.mxu0 0.0
    %308 = vmatprep.subr.mxu0 0.0
    %309 = vmatpush1.msra.mxu0 0.0
    %310 = vmatprep.mubr.f32.mxu0 0.0
    %311 = vmatmul.mubr.f32.gmra.mrb[0].mxu0 %v241
    %v312 = vpop.f32.mrb[0].mxu0
    %v313 = vadd.f32 0.0, %v312
    %v314 = vpop.f32.mrb[0].mxu0
    %315 = vmatprep.mubr.f32.mxu0 0.0
    %316 = vmatmul.mubr.f32.gmra.mrb[0].mxu0 %v244
    %v317 = vpop.f32.mrb[0].mxu0
    %v318 = vadd.f32 0.0, %v317
    %v319 = vpop.f32.mrb[0].mxu0
    %320 = vdwg.mxu0
    %vm321 = vcmp.ge.f32.partialorder %v313, 0.0
    %vm322 = vcmp.ge.f32.partialorder %v318, 0.0
    %v323 = vmul.f32 %v313, 0.2
    %v324 = vmul.f32 %v318, 0.2
    %v325 = vsel %vm321, %v313, %v323
    %v326 = vsel %vm322, %v318, %v324
    %v327 = vld [vmem:[#allocation8] sm:$0xff]
    %v328 = vld [vmem:[#allocation8 + $0x8] sm:$0xff]
    %v329 = vld [vmem:[#allocation8 + $0x10] sm:$0xff]
    %v330 = vld [vmem:[#allocation8 + $0x18] sm:$0xff]
    %v331 = vld [vmem:[#allocation8 + $0x20] sm:$0xff]
    %v332 = vld [vmem:[#allocation8 + $0x28] sm:$0xff]
    %v333 = vld [vmem:[#allocation8 + $0x30] sm:$0xff]
    %v334 = vld [vmem:[#allocation8 + $0x38] sm:$0xff]
    %v335 = vld [vmem:[#allocation8 + $0x40] sm:$0xff]
    %v336 = vld [vmem:[#allocation8 + $0x48] sm:$0xff]
    %v337 = vld [vmem:[#allocation8 + $0x50] sm:$0xff]
    %v338 = vld [vmem:[#allocation8 + $0x58] sm:$0xff]
    %v339 = vld [vmem:[#allocation8 + $0x60] sm:$0xff]
    %v340 = vld [vmem:[#allocation8 + $0x68] sm:$0xff]
    %v341 = vld [vmem:[#allocation8 + $0x70] sm:$0xff]
    %v342 = vld [vmem:[#allocation8 + $0x78] sm:$0xff]
    %v343 = vld [vmem:[#allocation8 + $0x80] sm:$0xff]
    %v344 = vld [vmem:[#allocation8 + $0x88] sm:$0xff]
    %v345 = vld [vmem:[#allocation8 + $0x90] sm:$0xff]
    %v346 = vld [vmem:[#allocation8 + $0x98] sm:$0xff]
    %v347 = vld [vmem:[#allocation8 + $0xa0] sm:$0xff]
    %v348 = vld [vmem:[#allocation8 + $0xa8] sm:$0xff]
    %v349 = vld [vmem:[#allocation8 + $0xb0] sm:$0xff]
    %v350 = vld [vmem:[#allocation8 + $0xb8] sm:$0xff]
    %v351 = vld [vmem:[#allocation8 + $0xc0] sm:$0xff]
    %v352 = vld [vmem:[#allocation8 + $0xc8] sm:$0xff]
    %v353 = vld [vmem:[#allocation8 + $0xd0] sm:$0xff]
    %v354 = vld [vmem:[#allocation8 + $0xd8] sm:$0xff]
    %v355 = vld [vmem:[#allocation8 + $0xe0] sm:$0xff]
    %v356 = vld [vmem:[#allocation8 + $0xe8] sm:$0xff]
    %v357 = vld [vmem:[#allocation8 + $0xf0] sm:$0xff]
    %v358 = vld [vmem:[#allocation8 + $0xf8] sm:$0xff]
    %359 = vmatprep.subr.mxu0 %v328
    %360 = vmatpush1.msra.mxu0 %v327
    %361 = vmatprep.subr.mxu0 %v330
    %362 = vmatpush1.msra.mxu0 %v329
    %363 = vmatprep.subr.mxu0 %v332
    %364 = vmatpush1.msra.mxu0 %v331
    %365 = vmatprep.subr.mxu0 %v334
    %366 = vmatpush1.msra.mxu0 %v333
    %367 = vmatprep.subr.mxu0 %v336
    %368 = vmatpush1.msra.mxu0 %v335
    %369 = vmatprep.subr.mxu0 %v338
    %370 = vmatpush1.msra.mxu0 %v337
    %371 = vmatprep.subr.mxu0 %v340
    %372 = vmatpush1.msra.mxu0 %v339
    %373 = vmatprep.subr.mxu0 %v342
    %374 = vmatpush1.msra.mxu0 %v341
    %375 = vmatprep.subr.mxu0 %v344
    %376 = vmatpush1.msra.mxu0 %v343
    %377 = vmatprep.subr.mxu0 %v346
    %378 = vmatpush1.msra.mxu0 %v345
    %379 = vmatprep.subr.mxu0 %v348
    %380 = vmatpush1.msra.mxu0 %v347
    %381 = vmatprep.subr.mxu0 %v350
    %382 = vmatpush1.msra.mxu0 %v349
    %383 = vmatprep.subr.mxu0 %v352
    %384 = vmatpush1.msra.mxu0 %v351
    %385 = vmatprep.subr.mxu0 %v354
    %386 = vmatpush1.msra.mxu0 %v353
    %387 = vmatprep.subr.mxu0 %v356
    %388 = vmatpush1.msra.mxu0 %v355
    %389 = vmatprep.subr.mxu0 %v358
    %390 = vmatpush1.msra.mxu0 %v357
    %391 = vmatprep.subr.mxu0 0.0
    %392 = vmatpush1.msra.mxu0 0.0
    %393 = vmatprep.subr.mxu0 0.0
    %394 = vmatpush1.msra.mxu0 0.0
    %395 = vmatprep.subr.mxu0 0.0
    %396 = vmatpush1.msra.mxu0 0.0
    %397 = vmatprep.subr.mxu0 0.0
    %398 = vmatpush1.msra.mxu0 0.0
    %399 = vmatprep.subr.mxu0 0.0
    %400 = vmatpush1.msra.mxu0 0.0
    %401 = vmatprep.subr.mxu0 0.0
    %402 = vmatpush1.msra.mxu0 0.0
    %403 = vmatprep.subr.mxu0 0.0
    %404 = vmatpush1.msra.mxu0 0.0
    %405 = vmatprep.subr.mxu0 0.0
    %406 = vmatpush1.msra.mxu0 0.0
    %407 = vmatprep.subr.mxu0 0.0
    %408 = vmatpush1.msra.mxu0 0.0
    %409 = vmatprep.subr.mxu0 0.0
    %410 = vmatpush1.msra.mxu0 0.0
    %411 = vmatprep.subr.mxu0 0.0
    %412 = vmatpush1.msra.mxu0 0.0
    %413 = vmatprep.subr.mxu0 0.0
    %414 = vmatpush1.msra.mxu0 0.0
    %415 = vmatprep.subr.mxu0 0.0
    %416 = vmatpush1.msra.mxu0 0.0
    %417 = vmatprep.subr.mxu0 0.0
    %418 = vmatpush1.msra.mxu0 0.0
    %419 = vmatprep.subr.mxu0 0.0
    %420 = vmatpush1.msra.mxu0 0.0
    %421 = vmatprep.subr.mxu0 0.0
    %422 = vmatpush1.msra.mxu0 0.0
    %423 = vmatprep.mubr.f32.mxu0 0.0
    %424 = vmatmul.mubr.f32.gmra.mrb[0].mxu0 %v325
    %v425 = vpop.f32.mrb[0].mxu0
    %v426 = vadd.f32 0.0, %v425
    %v427 = vpop.f32.mrb[0].mxu0
    %v428 = vadd.f32 0.0, %v427
    %429 = vmatprep.mubr.f32.mxu0 0.0
    %430 = vmatmul.mubr.f32.gmra.mrb[0].mxu0 %v326
    %v431 = vpop.f32.mrb[0].mxu0
    %v432 = vadd.f32 0.0, %v431
    %v433 = vpop.f32.mrb[0].mxu0
    %v434 = vadd.f32 0.0, %v433
    %435 = vdwg.mxu0
    %436 = vmatprep.subr.mxu0 %v428
    %437 = vmatpush1.msra.mxu0 %v426
    %438 = vmatprep.subr.mxu0 %v434
    %439 = vmatpush1.msra.mxu0 %v432
    %440 = vmatprep.subr.mxu0 0.0
    %441 = vmatpush1.msra.mxu0 0.0
    %442 = vmatprep.subr.mxu0 0.0
    %443 = vmatpush1.msra.mxu0 0.0
    %444 = vmatprep.subr.mxu0 0.0
    %445 = vmatpush1.msra.mxu0 0.0
    %446 = vmatprep.subr.mxu0 0.0
    %447 = vmatpush1.msra.mxu0 0.0
    %448 = vmatprep.subr.mxu0 0.0
    %449 = vmatpush1.msra.mxu0 0.0
    %450 = vmatprep.subr.mxu0 0.0
    %451 = vmatpush1.msra.mxu0 0.0
    %452 = vmatprep.subr.mxu0 0.0
    %453 = vmatpush1.msra.mxu0 0.0
    %454 = vmatprep.subr.mxu0 0.0
    %455 = vmatpush1.msra.mxu0 0.0
    %456 = vmatprep.subr.mxu0 0.0
    %457 = vmatpush1.msra.mxu0 0.0
    %458 = vmatprep.subr.mxu0 0.0
    %459 = vmatpush1.msra.mxu0 0.0
    %460 = vmatprep.subr.mxu0 0.0
    %461 = vmatpush1.msra.mxu0 0.0
    %462 = vmatprep.subr.mxu0 0.0
    %463 = vmatpush1.msra.mxu0 0.0
    %464 = vmatprep.subr.mxu0 0.0
    %465 = vmatpush1.msra.mxu0 0.0
    %466 = vmatprep.subr.mxu0 0.0
    %467 = vmatpush1.msra.mxu0 0.0
    %468 = vmatprep.subr.mxu0 0.0
    %469 = vmatpush1.msra.mxu0 0.0
    %470 = vmatprep.subr.mxu0 0.0
    %471 = vmatpush1.msra.mxu0 0.0
    %472 = vmatprep.subr.mxu0 0.0
    %473 = vmatpush1.msra.mxu0 0.0
    %474 = vmatprep.subr.mxu0 0.0
    %475 = vmatpush1.msra.mxu0 0.0
    %476 = vmatprep.subr.mxu0 0.0
    %477 = vmatpush1.msra.mxu0 0.0
    %478 = vmatprep.subr.mxu0 0.0
    %479 = vmatpush1.msra.mxu0 0.0
    %480 = vmatprep.subr.mxu0 0.0
    %481 = vmatpush1.msra.mxu0 0.0
    %482 = vmatprep.subr.mxu0 0.0
    %483 = vmatpush1.msra.mxu0 0.0
    %484 = vmatprep.subr.mxu0 0.0
    %485 = vmatpush1.msra.mxu0 0.0
    %486 = vmatprep.subr.mxu0 0.0
    %487 = vmatpush1.msra.mxu0 0.0
    %488 = vmatprep.subr.mxu0 0.0
    %489 = vmatpush1.msra.mxu0 0.0
    %490 = vmatprep.subr.mxu0 0.0
    %491 = vmatpush1.msra.mxu0 0.0
    %492 = vmatprep.subr.mxu0 0.0
    %493 = vmatpush1.msra.mxu0 0.0
    %494 = vmatprep.subr.mxu0 0.0
    %495 = vmatpush1.msra.mxu0 0.0
    %496 = vmatprep.subr.mxu0 0.0
    %497 = vmatpush1.msra.mxu0 0.0
    %498 = vmatprep.subr.mxu0 0.0
    %499 = vmatpush1.msra.mxu0 0.0
    %500 = vmatprep.mubr.f32.mxu0 0.0
    %501 = vmatmul.mubr.f32.gmra.mrb[0].mxu0 %v241
    %v502 = vpop.f32.mrb[0].mxu0
    %v503 = vadd.f32 0.0, %v502
    %v504 = vpop.f32.mrb[0].mxu0
    %v505 = vadd.f32 0.0, %v504
    %506 = vmatprep.mubr.f32.mxu0 0.0
    %507 = vmatmul.mubr.f32.gmra.mrb[0].mxu0 %v244
    %v508 = vpop.f32.mrb[0].mxu0
    %v509 = vadd.f32 0.0, %v508
    %v510 = vpop.f32.mrb[0].mxu0
    %v511 = vadd.f32 0.0, %v510
    %512 = vdwg.mxu0
    %513 = vxpose.xlu0.b32.start [1/16] %v503, 128
    %514 = vxpose.xlu0.b32.cont [2/16] %v509, 128
    %515 = vxpose.xlu0.b32.cont [3/16] 0.0, 128
    %516 = vxpose.xlu0.b32.cont [4/16] 0.0, 128
    %517 = vxpose.xlu0.b32.cont [5/16] 0.0, 128
    %518 = vxpose.xlu0.b32.cont [6/16] 0.0, 128
    %519 = vxpose.xlu0.b32.cont [7/16] 0.0, 128
    %520 = vxpose.xlu0.b32.cont [8/16] 0.0, 128
    %521 = vxpose.xlu0.b32.cont [9/16] 0.0, 128
    %522 = vxpose.xlu0.b32.cont [10/16] 0.0, 128
    %523 = vxpose.xlu0.b32.cont [11/16] 0.0, 128
    %524 = vxpose.xlu0.b32.cont [12/16] 0.0, 128
    %525 = vxpose.xlu0.b32.cont [13/16] 0.0, 128
    %526 = vxpose.xlu0.b32.cont [14/16] 0.0, 128
    %527 = vxpose.xlu0.b32.cont [15/16] 0.0, 128
    %528 = vxpose.xlu0.b32.end [16/16] 0.0, 128
    %v529 = vpop.trf.xlu0
    %v530 = vpop.trf.xlu0
    %v531 = vpop.trf.xlu0
    %v532 = vpop.trf.xlu0
    %v533 = vpop.trf.xlu0
    %v534 = vpop.trf.xlu0
    %v535 = vpop.trf.xlu0
    %v536 = vpop.trf.xlu0
    %v537 = vpop.trf.xlu0
    %v538 = vpop.trf.xlu0
    %v539 = vpop.trf.xlu0
    %v540 = vpop.trf.xlu0
    %v541 = vpop.trf.xlu0
    %v542 = vpop.trf.xlu0
    %v543 = vpop.trf.xlu0
    %v544 = vpop.trf.xlu0
    %545 = vxpose.xlu0.b32.start [1/16] %v505, 128
    %546 = vxpose.xlu0.b32.cont [2/16] %v511, 128
    %547 = vxpose.xlu0.b32.cont [3/16] 0.0, 128
    %548 = vxpose.xlu0.b32.cont [4/16] 0.0, 128
    %549 = vxpose.xlu0.b32.cont [5/16] 0.0, 128
    %550 = vxpose.xlu0.b32.cont [6/16] 0.0, 128
    %551 = vxpose.xlu0.b32.cont [7/16] 0.0, 128
    %552 = vxpose.xlu0.b32.cont [8/16] 0.0, 128
    %553 = vxpose.xlu0.b32.cont [9/16] 0.0, 128
    %554 = vxpose.xlu0.b32.cont [10/16] 0.0, 128
    %555 = vxpose.xlu0.b32.cont [11/16] 0.0, 128
    %556 = vxpose.xlu0.b32.cont [12/16] 0.0, 128
    %557 = vxpose.xlu0.b32.cont [13/16] 0.0, 128
    %558 = vxpose.xlu0.b32.cont [14/16] 0.0, 128
    %559 = vxpose.xlu0.b32.cont [15/16] 0.0, 128
    %560 = vxpose.xlu0.b32.end [16/16] 0.0, 128
    %v561 = vpop.trf.xlu0
    %v562 = vpop.trf.xlu0
    %v563 = vpop.trf.xlu0
    %v564 = vpop.trf.xlu0
    %v565 = vpop.trf.xlu0
    %v566 = vpop.trf.xlu0
    %v567 = vpop.trf.xlu0
    %v568 = vpop.trf.xlu0
    %v569 = vpop.trf.xlu0
    %v570 = vpop.trf.xlu0
    %v571 = vpop.trf.xlu0
    %v572 = vpop.trf.xlu0
    %v573 = vpop.trf.xlu0
    %v574 = vpop.trf.xlu0
    %v575 = vpop.trf.xlu0
    %v576 = vpop.trf.xlu0
    %v577 = vsel %vm75, %v529, 0.0
    %v578 = vsel %vm75, %v530, 0.0
    %v579 = vsel %vm75, %v531, 0.0
    %v580 = vsel %vm75, %v532, 0.0
    %v581 = vsel %vm75, %v533, 0.0
    %v582 = vsel %vm75, %v534, 0.0
    %v583 = vsel %vm75, %v535, 0.0
    %v584 = vsel %vm75, %v536, 0.0
    %v585 = vsel %vm75, %v537, 0.0
    %v586 = vsel %vm75, %v538, 0.0
    %v587 = vsel %vm75, %v539, 0.0
    %v588 = vsel %vm75, %v540, 0.0
    %v589 = vsel %vm75, %v541, 0.0
    %v590 = vsel %vm75, %v542, 0.0
    %v591 = vsel %vm75, %v543, 0.0
    %v592 = vsel %vm75, %v544, 0.0
    %v593 = vsel %vm75, %v561, 0.0
    %v594 = vsel %vm75, %v562, 0.0
    %v595 = vsel %vm75, %v563, 0.0
    %v596 = vsel %vm75, %v564, 0.0
    %v597 = vsel %vm75, %v565, 0.0
    %v598 = vsel %vm75, %v566, 0.0
    %v599 = vsel %vm75, %v567, 0.0
    %v600 = vsel %vm75, %v568, 0.0
    %v601 = vsel %vm75, %v569, 0.0
    %v602 = vsel %vm75, %v570, 0.0
    %v603 = vsel %vm75, %v571, 0.0
    %v604 = vsel %vm75, %v572, 0.0
    %v605 = vsel %vm75, %v573, 0.0
    %v606 = vsel %vm75, %v574, 0.0
    %v607 = vsel %vm75, %v575, 0.0
    %v608 = vsel %vm75, %v576, 0.0
    %v609 = vpack.c.bf16 %v578, %v577
    %v610 = vpack.c.bf16 %v580, %v579
    %v611 = vpack.c.bf16 %v582, %v581
    %v612 = vpack.c.bf16 %v584, %v583
    %v613 = vpack.c.bf16 %v586, %v585
    %v614 = vpack.c.bf16 %v588, %v587
    %v615 = vpack.c.bf16 %v590, %v589
    %v616 = vpack.c.bf16 %v592, %v591
    %v617 = vpack.c.bf16 %v594, %v593
    %v618 = vpack.c.bf16 %v596, %v595
    %v619 = vpack.c.bf16 %v598, %v597
    %v620 = vpack.c.bf16 %v600, %v599
    %v621 = vpack.c.bf16 %v602, %v601
    %v622 = vpack.c.bf16 %v604, %v603
    %v623 = vpack.c.bf16 %v606, %v605
    %v624 = vpack.c.bf16 %v608, %v607
    %v641 = vunpack.c.l.b16 %v609
    %v642 = vunpack.c.h.b16 %v609
    %v643 = vunpack.c.l.b16 %v610
    %v644 = vunpack.c.h.b16 %v610
    %v645 = vunpack.c.l.b16 %v611
    %v646 = vunpack.c.h.b16 %v611
    %v647 = vunpack.c.l.b16 %v612
    %v648 = vunpack.c.h.b16 %v612
    %v649 = vunpack.c.l.b16 %v613
    %v650 = vunpack.c.h.b16 %v613
    %v651 = vunpack.c.l.b16 %v614
    %v652 = vunpack.c.h.b16 %v614
    %v653 = vunpack.c.l.b16 %v615
    %v654 = vunpack.c.h.b16 %v615
    %v655 = vunpack.c.l.b16 %v616
    %v656 = vunpack.c.h.b16 %v616
    %v657 = vunpack.c.l.b16 %v617
    %v658 = vunpack.c.h.b16 %v617
    %v659 = vunpack.c.l.b16 %v618
    %v660 = vunpack.c.h.b16 %v618
    %v661 = vunpack.c.l.b16 %v619
    %v662 = vunpack.c.h.b16 %v619
    %v663 = vunpack.c.l.b16 %v620
    %v664 = vunpack.c.h.b16 %v620
    %v665 = vunpack.c.l.b16 %v621
    %v666 = vunpack.c.h.b16 %v621
    %v667 = vunpack.c.l.b16 %v622
    %v668 = vunpack.c.h.b16 %v622
    %v669 = vunpack.c.l.b16 %v623
    %v670 = vunpack.c.h.b16 %v623
    %v671 = vunpack.c.l.b16 %v624
    %v672 = vunpack.c.h.b16 %v624
    %v673 = vpack.c.b16 %v641, %v641
    %v674 = vpack.c.b16 %v642, %v642
    %v675 = vpack.c.b16 %v643, %v643
    %v676 = vpack.c.b16 %v644, %v644
    %v677 = vpack.c.b16 %v645, %v645
    %v678 = vpack.c.b16 %v646, %v646
    %v679 = vpack.c.b16 %v647, %v647
    %v680 = vpack.c.b16 %v648, %v648
    %v681 = vpack.c.b16 %v649, %v649
    %v682 = vpack.c.b16 %v650, %v650
    %v683 = vpack.c.b16 %v651, %v651
    %v684 = vpack.c.b16 %v652, %v652
    %v685 = vpack.c.b16 %v653, %v653
    %v686 = vpack.c.b16 %v654, %v654
    %v687 = vpack.c.b16 %v655, %v655
    %v688 = vpack.c.b16 %v656, %v656
    %v689 = vpack.c.b16 %v657, %v657
    %v690 = vpack.c.b16 %v658, %v658
    %v691 = vpack.c.b16 %v659, %v659
    %v692 = vpack.c.b16 %v660, %v660
    %v693 = vpack.c.b16 %v661, %v661
    %v694 = vpack.c.b16 %v662, %v662
    %v695 = vpack.c.b16 %v663, %v663
    %v696 = vpack.c.b16 %v664, %v664
    %v697 = vpack.c.b16 %v665, %v665
    %v698 = vpack.c.b16 %v666, %v666
    %v699 = vpack.c.b16 %v667, %v667
    %v700 = vpack.c.b16 %v668, %v668
    %v701 = vpack.c.b16 %v669, %v669
    %v702 = vpack.c.b16 %v670, %v670
    %v703 = vpack.c.b16 %v671, %v671
    %v704 = vpack.c.b16 %v672, %v672
    %737 = vst [vmem:[#allocation10] sm:$0xf] %v673
    %738 = vst [vmem:[#allocation10 + $0x4] sm:$0xf] %v674
    %739 = vst [vmem:[#allocation10 + $0x8] sm:$0xf] %v675
    %740 = vst [vmem:[#allocation10 + $0xc] sm:$0xf] %v676
    %741 = vst [vmem:[#allocation10 + $0x10] sm:$0xf] %v677
    %742 = vst [vmem:[#allocation10 + $0x14] sm:$0xf] %v678
    %743 = vst [vmem:[#allocation10 + $0x18] sm:$0xf] %v679
    %744 = vst [vmem:[#allocation10 + $0x1c] sm:$0xf] %v680
    %745 = vst [vmem:[#allocation10 + $0x20] sm:$0xf] %v681
    %746 = vst [vmem:[#allocation10 + $0x24] sm:$0xf] %v682
    %747 = vst [vmem:[#allocation10 + $0x28] sm:$0xf] %v683
    %748 = vst [vmem:[#allocation10 + $0x2c] sm:$0xf] %v684
    %749 = vst [vmem:[#allocation10 + $0x30] sm:$0xf] %v685
    %750 = vst [vmem:[#allocation10 + $0x34] sm:$0xf] %v686
    %751 = vst [vmem:[#allocation10 + $0x38] sm:$0xf] %v687
    %752 = vst [vmem:[#allocation10 + $0x3c] sm:$0xf] %v688
    %753 = vst [vmem:[#allocation10 + $0x40] sm:$0xf] %v689
    %754 = vst [vmem:[#allocation10 + $0x44] sm:$0xf] %v690
    %755 = vst [vmem:[#allocation10 + $0x48] sm:$0xf] %v691
    %756 = vst [vmem:[#allocation10 + $0x4c] sm:$0xf] %v692
    %757 = vst [vmem:[#allocation10 + $0x50] sm:$0xf] %v693
    %758 = vst [vmem:[#allocation10 + $0x54] sm:$0xf] %v694
    %759 = vst [vmem:[#allocation10 + $0x58] sm:$0xf] %v695
    %760 = vst [vmem:[#allocation10 + $0x5c] sm:$0xf] %v696
    %761 = vst [vmem:[#allocation10 + $0x60] sm:$0xf] %v697
    %762 = vst [vmem:[#allocation10 + $0x64] sm:$0xf] %v698
    %763 = vst [vmem:[#allocation10 + $0x68] sm:$0xf] %v699
    %764 = vst [vmem:[#allocation10 + $0x6c] sm:$0xf] %v700
    %765 = vst [vmem:[#allocation10 + $0x70] sm:$0xf] %v701
    %766 = vst [vmem:[#allocation10 + $0x74] sm:$0xf] %v702
    %767 = vst [vmem:[#allocation10 + $0x78] sm:$0xf] %v703
    %768 = vst [vmem:[#allocation10 + $0x7c] sm:$0xf] %v704
    // Predicated region
    $region34: #{tpu_custom_call.1} parent=1 // pred_check
      _
    $region35: #{tpu_custom_call.1} parent=1 // pred_check_branch
      %770 = sbr.rel (0) target = $region37
    $region36: #{tpu_custom_call.1} parent=1 // pred_region
      %s772 = ssub.s32 2048, 2048
      %773 = vsyncadd [#allocation4], %s772
      %s774 = sshll.u32 [#allocation10], 4
      %s775 = int_to_ptr.vmem [resolvable:$true] %s774
      %780 = dma.vmem_to_hbm [thread:$0]  %s775, 2048, %s4, [#allocation4], 64, 64, 4
    $region37: #{tpu_custom_call.1} parent=1 // pred_fallthru
      _
    // Predicated region
    $region38: #{tpu_custom_call.1} parent=1 // pred_check
      _
    $region39: #{tpu_custom_call.1} parent=1 // pred_check_branch
      %782 = sbr.rel (0) target = $region41
    $region40: #{tpu_custom_call.1} parent=1 // pred_region
      %783 = dma.done [#allocation4], 2048
    $region41: #{tpu_custom_call.1} parent=1 // pred_fallthru
      _
    %784 = vsyncpa [#allocation3], 1
    %785 = vsyncpa [#allocation6], 1
    %786 = vsyncpa [#allocation9], 1
    %787 = vsyncpa [#allocation4], 1

</llo_original>
